<compile_context>
chip_gen: v6e
topology: v6e:2x2x1
jax: 0.10.0
libtpu: 0.0.40
codegen_flags: <defaults>
</compile_context>

<pallas_src>
import jax
import jax.numpy as jnp
from jax import lax
from jax.experimental import pallas as pl
from jax.experimental.pallas import tpu as pltpu


_NEG_SLOPE = 0.2
_STATIC_UNROLL_MAX = 8      # statically unroll the residual blocks up to this count
_VMEM_RESERVE = 16 << 20    # headroom kept free when sizing the resident path


def _lrelu(v):
    # max(v, a*v) == LeakyReLU(a) for 0 < a < 1 (2 VALU ops vs cmp+mul+select).
    return jnp.maximum(v, _NEG_SLOPE * v)


def _round_up(v, m):
    return (v + m - 1) // m * m


def _physical_vmem_bytes():
    try:
        return int(pltpu.get_tpu_info().vmem_capacity_bytes)
    except Exception:
        return 64 << 20     # conservative default (v7x per-TC VMEM)


def _choose_batch_tile(B, requested):
    """128-multiple batch tile; prefer >=2 grid steps (megacore) when possible."""
    if requested is not None:
        return _round_up(max(int(requested), 128), 128)
    B128 = _round_up(B, 128)
    tb = 512 if B128 >= 512 else max(min(256, B128), 128)
    while tb > 128 and _round_up(B, tb) // tb < 2:
        tb //= 2            # 512 -> 256 -> 128, always a 128 multiple
    return tb


# ----------------------------------------------------------------------------
# Kernel A: all weights VMEM-resident (fits comfortably on v5e/v6e, small nets).
# ----------------------------------------------------------------------------
def _resident_kernel(x_ref, w_in_ref, b_in_ref, w1s_ref, b1s_ref,
                     w2s_ref, b2s_ref, w_out_ref, o_ref):
    x_bf = x_ref[...].astype(jnp.bfloat16)          # in-kernel cast (VPU)
    out = _lrelu(jnp.dot(x_bf, w_in_ref[...],
                         preferred_element_type=jnp.float32) + b_in_ref[...])

    nb = w1s_ref.shape[0]

    def block(i, out_f32):
        h = _lrelu(jnp.dot(out_f32.astype(jnp.bfloat16), w1s_ref[i],
                           preferred_element_type=jnp.float32) + b1s_ref[i])
        h = (jnp.dot(h.astype(jnp.bfloat16), w2s_ref[i],
                     preferred_element_type=jnp.float32)
             + b2s_ref[i] + out_f32)                 # skip connection (f32)
        return _lrelu(h)

    if nb <= _STATIC_UNROLL_MAX:
        for i in range(nb):                          # static unroll: LLO overlap
            out = block(i, out)
    else:
        out = lax.fori_loop(0, nb, block, out)       # large nb: bounded code size

    # Lane-dense output: (1, hidden) @ (tb, hidden)^T -> (1, tb), batch on lanes.
    y = lax.dot_general(w_out_ref[...], out.astype(jnp.bfloat16),
                        dimension_numbers=(((1,), (1,)), ((), ())),
                        preferred_element_type=jnp.float32)
    o_ref[...] = jnp.reshape(y, o_ref.shape).astype(o_ref.dtype)


# ----------------------------------------------------------------------------
# Kernel B: per-block weight streaming (w1s/w2s stay in HBM; double-buffered
# DMA of one block's weights while the previous block computes).  Used when the
# resident stacks would overflow VMEM (notably v7x's 64 MiB/TC).
# ----------------------------------------------------------------------------
def _streaming_kernel(x_ref, w_in_ref, b_in_ref, w1s_hbm, b1s_ref,
                      w2s_hbm, b2s_ref, w_out_ref, o_ref,
                      w1_buf, w2_buf, sem, out_buf):
    nb = b1s_ref.shape[0]

    def start_fetch(i, slot):
        pltpu.make_async_copy(w1s_hbm.at[i], w1_buf.at[slot], sem.at[0, slot]).start()
        pltpu.make_async_copy(w2s_hbm.at[i], w2_buf.at[slot], sem.at[1, slot]).start()

    start_fetch(0, 0)   # overlap block-0 weight DMA with the input-layer matmul

    x_bf = x_ref[...].astype(jnp.bfloat16)
    out_buf[...] = _lrelu(jnp.dot(x_bf, w_in_ref[...],
                                  preferred_element_type=jnp.float32) + b_in_ref[...])

    @pl.loop(0, nb)
    def _(i):
        slot = i & 1
        pltpu.make_async_copy(w1s_hbm.at[0], w1_buf.at[slot], sem.at[0, slot]).wait()
        pltpu.make_async_copy(w2s_hbm.at[0], w2_buf.at[slot], sem.at[1, slot]).wait()

        @pl.when(i + 1 < nb)
        def _():
            start_fetch(i + 1, 1 - slot)             # prefetch next block's weights

        residual = out_buf[...]
        h = _lrelu(jnp.dot(residual.astype(jnp.bfloat16), w1_buf[slot],
                           preferred_element_type=jnp.float32) + b1s_ref[i])
        h = (jnp.dot(h.astype(jnp.bfloat16), w2_buf[slot],
                     preferred_element_type=jnp.float32)
             + b2s_ref[i] + residual)
        out_buf[...] = _lrelu(h)

    y = lax.dot_general(w_out_ref[...], out_buf[...].astype(jnp.bfloat16),
                        dimension_numbers=(((1,), (1,)), ((), ())),
                        preferred_element_type=jnp.float32)
    o_ref[...] = jnp.reshape(y, o_ref.shape).astype(o_ref.dtype)


# ----------------------------------------------------------------------------
# Wrapper
# ----------------------------------------------------------------------------
def prepare_params(params):
    """One-time cast of weight matrices to bf16 (do this at init / param update,
    not per forward call); biases stay f32."""
    w_in, b_in, w1s, b1s, w2s, b2s, w_out, b_out = params
    return (w_in.astype(jnp.bfloat16), b_in.astype(jnp.float32),
            w1s.astype(jnp.bfloat16), b1s.astype(jnp.float32),
            w2s.astype(jnp.bfloat16), b2s.astype(jnp.float32),
            w_out.astype(jnp.bfloat16), b_out.astype(jnp.float32))


def discriminator_mlp_skip(x, params, *, batch_tile=None, force_stream=False,
                           interpret=False):
    """x: (B, input_size) float32 -> (B, 1) float32."""
    w_in, b_in, w1s, b1s, w2s, b2s, w_out, b_out = params
    B, in_size = x.shape
    hidden = w_in.shape[1]
    nb = w1s.shape[0]

    # No-op if prepare_params() already cached bf16 copies.
    w_in_bf = w_in if w_in.dtype == jnp.bfloat16 else w_in.astype(jnp.bfloat16)
    w1s_bf = w1s if w1s.dtype == jnp.bfloat16 else w1s.astype(jnp.bfloat16)
    w2s_bf = w2s if w2s.dtype == jnp.bfloat16 else w2s.astype(jnp.bfloat16)
    w_out_bf = w_out if w_out.dtype == jnp.bfloat16 else w_out.astype(jnp.bfloat16)

    tb = _choose_batch_tile(B, batch_tile)          # 128-multiple tile
    B_pad = _round_up(B, tb)
    num_tiles = B_pad // tb
    x_p = jnp.pad(x, ((0, B_pad - B), (0, 0))) if B_pad != B else x

    # ---- VMEM budgeting: resident weights vs per-block streaming -------------
    phys_vmem = _physical_vmem_bytes()
    bias_bytes = 4 * (b_in.size + b1s.size + b2s.size)
    small_weight_bytes = 2 * (w_in_bf.size + w_out_bf.size)
    stack_weight_bytes = 2 * (w1s_bf.size + w2s_bf.size)
    pipe_bytes = 2 * (tb * in_size * 4) + 2 * (tb * 4)   # x (f32) + out double-buffers
    act_bytes = 6 * tb * hidden * 4                      # in-kernel f32 activations
    resident_bytes = (small_weight_bytes + stack_weight_bytes + bias_bytes
                      + pipe_bytes + act_bytes)
    use_stream = force_stream or (nb > 0 and
                                  resident_bytes > phys_vmem - _VMEM_RESERVE)

    vmem_full = pl.BlockSpec(memory_space=pltpu.MemorySpace.VMEM)
    x_spec = pl.BlockSpec((tb, in_size), lambda i: (i, 0))
    out_spec = pl.BlockSpec((1, 1, tb), lambda i: (i, 0, 0))

    flops = 2 * B_pad * hidden * (in_size + 2 * nb * hidden + 1)
    bytes_accessed = (x_p.size * 4 + small_weight_bytes + stack_weight_bytes
                      + bias_bytes + B_pad * 4)
    cost = pl.CostEstimate(flops=int(flops), transcendentals=0,
                           bytes_accessed=int(bytes_accessed))

    if not use_stream:
        kernel = _resident_kernel
        in_specs = [x_spec, vmem_full, vmem_full, vmem_full, vmem_full,
                    vmem_full, vmem_full, vmem_full]
        scratch_shapes = []
        footprint = resident_bytes
    else:
        kernel = _streaming_kernel
        in_specs = [x_spec, vmem_full, vmem_full,
                    pl.BlockSpec(memory_space=pl.ANY),   # w1s stays in HBM
                    vmem_full,
                    pl.BlockSpec(memory_space=pl.ANY),   # w2s stays in HBM
                    vmem_full, vmem_full]
        scratch_shapes = [
            pltpu.VMEM((2, hidden, hidden), jnp.bfloat16),   # w1 double-buffer
            pltpu.VMEM((2, hidden, hidden), jnp.bfloat16),   # w2 double-buffer
            pltpu.SemaphoreType.DMA((2, 2)),
            pltpu.VMEM((tb, hidden), jnp.float32),           # residual / out buffer
        ]
        footprint = (small_weight_bytes + bias_bytes + pipe_bytes + act_bytes
                     + 2 * 2 * hidden * hidden * 2 + tb * hidden * 4)

    vmem_limit = int(min(max(footprint + (8 << 20), 32 << 20),
                         phys_vmem - (2 << 20)))

    out = pl.pallas_call(
        kernel,
        out_shape=jax.ShapeDtypeStruct((num_tiles, 1, tb), jnp.float32),
        grid_spec=pltpu.PrefetchScalarGridSpec(
            num_scalar_prefetch=0,
            grid=(num_tiles,),
            in_specs=in_specs,
            out_specs=out_spec,
            scratch_shapes=scratch_shapes),
        compiler_params=pltpu.CompilerParams(
            dimension_semantics=("parallel",),
            vmem_limit_bytes=vmem_limit),
        cost_estimate=cost,
        interpret=interpret,
    )(x_p, w_in_bf, b_in, w1s_bf, b1s, w2s_bf, b2s, w_out_bf)

    # (num_tiles, 1, tb) lane-dense kernel output -> (B, 1); output bias added
    # here instead of shipping a padded (1,1) VMEM operand into the kernel.
    return out.reshape(B_pad)[:B].reshape(B, 1) + b_out


# ----------------------------------------------------------------------------
# Params / reference
# ----------------------------------------------------------------------------
def init_params(key, input_size, hidden_size, num_residual_blocks):
    """Mirror weights_init_normal: N(0, 0.03) weights, zero biases.

    Hidden-layer weights are stored as (in, out) so the kernel computes x @ W;
    w_out is stored in PyTorch layout (1, hidden) and applied as x @ w_out.T.
    """
    ks = jax.random.split(key, 4)
    std = 0.03
    w_in = std * jax.random.normal(ks[0], (input_size, hidden_size), jnp.float32)
    b_in = jnp.zeros((1, hidden_size), jnp.float32)
    w1s = std * jax.random.normal(
        ks[1], (num_residual_blocks, hidden_size, hidden_size), jnp.float32)
    b1s = jnp.zeros((num_residual_blocks, 1, hidden_size), jnp.float32)
    w2s = std * jax.random.normal(
        ks[2], (num_residual_blocks, hidden_size, hidden_size), jnp.float32)
    b2s = jnp.zeros((num_residual_blocks, 1, hidden_size), jnp.float32)
    w_out = std * jax.random.normal(ks[3], (1, hidden_size), jnp.float32)
    b_out = jnp.zeros((1, 1), jnp.float32)
    return (w_in, b_in, w1s, b1s, w2s, b2s, w_out, b_out)


def reference_forward(x, params):
    """Pure-JAX f32 reference matching the PyTorch module semantics."""
    w_in, b_in, w1s, b1s, w2s, b2s, w_out, b_out = params
    out = _lrelu(x @ w_in + b_in)
    for i in range(w1s.shape[0]):
        h = _lrelu(out @ w1s[i] + b1s[i])
        h = h @ w2s[i] + b2s[i] + out
        out = _lrelu(h)
    return out @ w_out.T + b_out


if __name__ == "__main__":
    key = jax.random.PRNGKey(0)
    k1, k2, k3, k4 = jax.random.split(key, 4)

    # Config A: small shapes, VMEM-resident weights, statically unrolled blocks.
    batch, input_size, hidden_size, nb = 64, 16, 32, 2
    xA = jax.random.normal(k1, (batch, input_size), jnp.float32)
    pA = init_params(k2, input_size, hidden_size, nb)
    yA = jax.block_until_ready(discriminator_mlp_skip(xA, prepare_params(pA)))
    yA_ref = reference_forward(xA, pA)
    assert yA.shape == (batch, 1)
    assert jnp.allclose(yA, yA_ref, atol=1e-2, rtol=5e-2), "mismatch (config A, resident)"

    # Config B: ragged batch (padding) + forced per-block weight-streaming path
    # (exercises the v7x VMEM-overflow fallback on any chip).
    xB = jax.random.normal(k3, (100, 64), jnp.float32)
    pB = init_params(k4, 64, 256, 3)
    yB = jax.block_until_ready(
        discriminator_mlp_skip(xB, prepare_params(pB), force_stream=True))
    yB_ref = reference_forward(xB, pB)
    assert yB.shape == (100, 1)
    assert jnp.allclose(yB, yB_ref, atol=1e-2, rtol=5e-2), "mismatch (config B, streaming)"

    print("KERNEL_OK")
</pallas_src>

<mosaic_0001>
module attributes {stable_mosaic.version = 11 : i64} {
  func.func @_resident_kernel(%arg0: i32, %arg1: memref<128x16xf32, #tpu.memory_space<vmem>>, %arg2: memref<16x32xbf16, #tpu.memory_space<vmem>>, %arg3: memref<1x32xf32, #tpu.memory_space<vmem>>, %arg4: memref<2x32x32xbf16, #tpu.memory_space<vmem>>, %arg5: memref<2x1x32xf32, #tpu.memory_space<vmem>>, %arg6: memref<2x32x32xbf16, #tpu.memory_space<vmem>>, %arg7: memref<2x1x32xf32, #tpu.memory_space<vmem>>, %arg8: memref<1x32xbf16, #tpu.memory_space<vmem>>, %arg9: memref<1x1x128xf32, #tpu.memory_space<vmem>>) attributes {dimension_semantics = [#tpu.dimension_semantics<parallel>], iteration_bounds = array<i64: 1>, scalar_prefetch = 0 : i64, scratch_operands = 0 : i64, tpu.core_type = #tpu.core_type<tc>, window_params = [{transform_indices = @transform_0, window_bounds = array<i64: 128, 16>}, {pipeline_mode = #tpu.pipeline_mode<synchronous>, transform_indices = @transform_1, window_bounds = array<i64: 16, 32>}, {pipeline_mode = #tpu.pipeline_mode<synchronous>, transform_indices = @transform_2, window_bounds = array<i64: 1, 32>}, {pipeline_mode = #tpu.pipeline_mode<synchronous>, transform_indices = @transform_3, window_bounds = array<i64: 2, 32, 32>}, {pipeline_mode = #tpu.pipeline_mode<synchronous>, transform_indices = @transform_4, window_bounds = array<i64: 2, 1, 32>}, {pipeline_mode = #tpu.pipeline_mode<synchronous>, transform_indices = @transform_5, window_bounds = array<i64: 2, 32, 32>}, {pipeline_mode = #tpu.pipeline_mode<synchronous>, transform_indices = @transform_6, window_bounds = array<i64: 2, 1, 32>}, {pipeline_mode = #tpu.pipeline_mode<synchronous>, transform_indices = @transform_7, window_bounds = array<i64: 1, 32>}, {transform_indices = @transform_8, window_bounds = array<i64: 1, 1, 128>}]} {
    %c0 = arith.constant 0 : index
    %c0_0 = arith.constant 0 : index
    %0 = vector.load %arg1[%c0, %c0_0] : memref<128x16xf32, #tpu.memory_space<vmem>>, vector<128x16xf32>
    %1 = arith.truncf %0 : vector<128x16xf32> to vector<128x16xbf16>
    %c0_1 = arith.constant 0 : index
    %c0_2 = arith.constant 0 : index
    %2 = vector.load %arg2[%c0_1, %c0_2] : memref<16x32xbf16, #tpu.memory_space<vmem>>, vector<16x32xbf16>
    %cst = arith.constant dense<0.000000e+00> : vector<128x32xf32>
    %3 = tpu.matmul %1, %2, %cst {dimension_numbers = #tpu.dot_dimension_numbers<[1], [0], [0], [1], [0, 0, 1, 1], [], []>} : vector<128x16xbf16>, vector<16x32xbf16>, vector<128x32xf32> -> vector<128x32xf32>
    %c0_3 = arith.constant 0 : index
    %c0_4 = arith.constant 0 : index
    %4 = vector.load %arg3[%c0_3, %c0_4] : memref<1x32xf32, #tpu.memory_space<vmem>>, vector<1x32xf32>
    %5 = vector.broadcast %4 : vector<1x32xf32> to vector<128x32xf32>
    %6 = arith.addf %3, %5 : vector<128x32xf32>
    %cst_5 = arith.constant 2.000000e-01 : f32
    %7 = vector.broadcast %cst_5 : f32 to vector<128x32xf32>
    %8 = arith.mulf %7, %6 : vector<128x32xf32>
    %9 = arith.maximumf %6, %8 : vector<128x32xf32>
    %10 = arith.truncf %9 : vector<128x32xf32> to vector<128x32xbf16>
    %c0_6 = arith.constant 0 : index
    %c0_7 = arith.constant 0 : index
    %c0_8 = arith.constant 0 : index
    %11 = vector.load %arg4[%c0_6, %c0_7, %c0_8] : memref<2x32x32xbf16, #tpu.memory_space<vmem>>, vector<1x32x32xbf16>
    %12 = vector.shape_cast %11 : vector<1x32x32xbf16> to vector<32x32xbf16>
    %cst_9 = arith.constant dense<0.000000e+00> : vector<128x32xf32>
    %13 = tpu.matmul %10, %12, %cst_9 {dimension_numbers = #tpu.dot_dimension_numbers<[1], [0], [0], [1], [0, 0, 1, 1], [], []>} : vector<128x32xbf16>, vector<32x32xbf16>, vector<128x32xf32> -> vector<128x32xf32>
    %c0_10 = arith.constant 0 : index
    %c0_11 = arith.constant 0 : index
    %c0_12 = arith.constant 0 : index
    %14 = vector.load %arg5[%c0_10, %c0_11, %c0_12] : memref<2x1x32xf32, #tpu.memory_space<vmem>>, vector<1x1x32xf32>
    %15 = vector.shape_cast %14 : vector<1x1x32xf32> to vector<1x32xf32>
    %16 = vector.broadcast %15 : vector<1x32xf32> to vector<128x32xf32>
    %17 = arith.addf %13, %16 : vector<128x32xf32>
    %cst_13 = arith.constant 2.000000e-01 : f32
    %18 = vector.broadcast %cst_13 : f32 to vector<128x32xf32>
    %19 = arith.mulf %18, %17 : vector<128x32xf32>
    %20 = arith.maximumf %17, %19 : vector<128x32xf32>
    %21 = arith.truncf %20 : vector<128x32xf32> to vector<128x32xbf16>
    %c0_14 = arith.constant 0 : index
    %c0_15 = arith.constant 0 : index
    %c0_16 = arith.constant 0 : index
    %22 = vector.load %arg6[%c0_14, %c0_15, %c0_16] : memref<2x32x32xbf16, #tpu.memory_space<vmem>>, vector<1x32x32xbf16>
    %23 = vector.shape_cast %22 : vector<1x32x32xbf16> to vector<32x32xbf16>
    %cst_17 = arith.constant dense<0.000000e+00> : vector<128x32xf32>
    %24 = tpu.matmul %21, %23, %cst_17 {dimension_numbers = #tpu.dot_dimension_numbers<[1], [0], [0], [1], [0, 0, 1, 1], [], []>} : vector<128x32xbf16>, vector<32x32xbf16>, vector<128x32xf32> -> vector<128x32xf32>
    %c0_18 = arith.constant 0 : index
    %c0_19 = arith.constant 0 : index
    %c0_20 = arith.constant 0 : index
    %25 = vector.load %arg7[%c0_18, %c0_19, %c0_20] : memref<2x1x32xf32, #tpu.memory_space<vmem>>, vector<1x1x32xf32>
    %26 = vector.shape_cast %25 : vector<1x1x32xf32> to vector<1x32xf32>
    %27 = vector.broadcast %26 : vector<1x32xf32> to vector<128x32xf32>
    %28 = arith.addf %24, %27 : vector<128x32xf32>
    %29 = arith.addf %28, %9 : vector<128x32xf32>
    %cst_21 = arith.constant 2.000000e-01 : f32
    %30 = vector.broadcast %cst_21 : f32 to vector<128x32xf32>
    %31 = arith.mulf %30, %29 : vector<128x32xf32>
    %32 = arith.maximumf %29, %31 : vector<128x32xf32>
    %33 = arith.truncf %32 : vector<128x32xf32> to vector<128x32xbf16>
    %c1 = arith.constant 1 : index
    %c0_22 = arith.constant 0 : index
    %c0_23 = arith.constant 0 : index
    %34 = vector.load %arg4[%c1, %c0_22, %c0_23] : memref<2x32x32xbf16, #tpu.memory_space<vmem>>, vector<1x32x32xbf16>
    %35 = vector.shape_cast %34 : vector<1x32x32xbf16> to vector<32x32xbf16>
    %cst_24 = arith.constant dense<0.000000e+00> : vector<128x32xf32>
    %36 = tpu.matmul %33, %35, %cst_24 {dimension_numbers = #tpu.dot_dimension_numbers<[1], [0], [0], [1], [0, 0, 1, 1], [], []>} : vector<128x32xbf16>, vector<32x32xbf16>, vector<128x32xf32> -> vector<128x32xf32>
    %c1_25 = arith.constant 1 : index
    %c0_26 = arith.constant 0 : index
    %c0_27 = arith.constant 0 : index
    %37 = vector.load %arg5[%c1_25, %c0_26, %c0_27] : memref<2x1x32xf32, #tpu.memory_space<vmem>>, vector<1x1x32xf32>
    %38 = vector.shape_cast %37 : vector<1x1x32xf32> to vector<1x32xf32>
    %39 = vector.broadcast %38 : vector<1x32xf32> to vector<128x32xf32>
    %40 = arith.addf %36, %39 : vector<128x32xf32>
    %cst_28 = arith.constant 2.000000e-01 : f32
    %41 = vector.broadcast %cst_28 : f32 to vector<128x32xf32>
    %42 = arith.mulf %41, %40 : vector<128x32xf32>
    %43 = arith.maximumf %40, %42 : vector<128x32xf32>
    %44 = arith.truncf %43 : vector<128x32xf32> to vector<128x32xbf16>
    %c1_29 = arith.constant 1 : index
    %c0_30 = arith.constant 0 : index
    %c0_31 = arith.constant 0 : index
    %45 = vector.load %arg6[%c1_29, %c0_30, %c0_31] : memref<2x32x32xbf16, #tpu.memory_space<vmem>>, vector<1x32x32xbf16>
    %46 = vector.shape_cast %45 : vector<1x32x32xbf16> to vector<32x32xbf16>
    %cst_32 = arith.constant dense<0.000000e+00> : vector<128x32xf32>
    %47 = tpu.matmul %44, %46, %cst_32 {dimension_numbers = #tpu.dot_dimension_numbers<[1], [0], [0], [1], [0, 0, 1, 1], [], []>} : vector<128x32xbf16>, vector<32x32xbf16>, vector<128x32xf32> -> vector<128x32xf32>
    %c1_33 = arith.constant 1 : index
    %c0_34 = arith.constant 0 : index
    %c0_35 = arith.constant 0 : index
    %48 = vector.load %arg7[%c1_33, %c0_34, %c0_35] : memref<2x1x32xf32, #tpu.memory_space<vmem>>, vector<1x1x32xf32>
    %49 = vector.shape_cast %48 : vector<1x1x32xf32> to vector<1x32xf32>
    %50 = vector.broadcast %49 : vector<1x32xf32> to vector<128x32xf32>
    %51 = arith.addf %47, %50 : vector<128x32xf32>
    %52 = arith.addf %51, %32 : vector<128x32xf32>
    %cst_36 = arith.constant 2.000000e-01 : f32
    %53 = vector.broadcast %cst_36 : f32 to vector<128x32xf32>
    %54 = arith.mulf %53, %52 : vector<128x32xf32>
    %55 = arith.maximumf %52, %54 : vector<128x32xf32>
    %c0_37 = arith.constant 0 : index
    %c0_38 = arith.constant 0 : index
    %56 = vector.load %arg8[%c0_37, %c0_38] : memref<1x32xbf16, #tpu.memory_space<vmem>>, vector<1x32xbf16>
    %57 = arith.truncf %55 : vector<128x32xf32> to vector<128x32xbf16>
    %cst_39 = arith.constant dense<0.000000e+00> : vector<1x128xf32>
    %58 = tpu.matmul %56, %57, %cst_39 {dimension_numbers = #tpu.dot_dimension_numbers<[1], [1], [0], [0], [0, 0, 1, 0], [], []>} : vector<1x32xbf16>, vector<128x32xbf16>, vector<1x128xf32> -> vector<1x128xf32>
    %59 = vector.shape_cast %58 : vector<1x128xf32> to vector<1x1x128xf32>
    %c0_40 = arith.constant 0 : index
    %c0_41 = arith.constant 0 : index
    %c0_42 = arith.constant 0 : index
    %60 = vector.load %arg9[%c0_40, %c0_41, %c0_42] : memref<1x1x128xf32, #tpu.memory_space<vmem>>, vector<1x1x128xf32>
    tpu.vector_store %arg9[%c0_40, %c0_41, %c0_42], %59 {strides = array<i32>} : memref<1x1x128xf32, #tpu.memory_space<vmem>>, vector<1x1x128xf32>,
    return
  }
  func.func @transform_0(%arg0: i32) -> (i32, i32) {
    %c0_i32 = arith.constant 0 : i32
    %c0_i32_0 = arith.constant 0 : i32
    return %arg0, %c0_i32 : i32, i32
  }
  func.func @transform_1(%arg0: i32) -> (i32, i32) {
    %c0_i32 = arith.constant 0 : i32
    %c0_i32_0 = arith.constant 0 : i32
    %c0_i32_1 = arith.constant 0 : i32
    return %c0_i32, %c0_i32_0 : i32, i32
  }
  func.func @transform_2(%arg0: i32) -> (i32, i32) {
    %c0_i32 = arith.constant 0 : i32
    %c0_i32_0 = arith.constant 0 : i32
    %c0_i32_1 = arith.constant 0 : i32
    return %c0_i32, %c0_i32_0 : i32, i32
  }
  func.func @transform_3(%arg0: i32) -> (i32, i32, i32) {
    %c0_i32 = arith.constant 0 : i32
    %c0_i32_0 = arith.constant 0 : i32
    %c0_i32_1 = arith.constant 0 : i32
    %c0_i32_2 = arith.constant 0 : i32
    return %c0_i32, %c0_i32_0, %c0_i32_1 : i32, i32, i32
  }
  func.func @transform_4(%arg0: i32) -> (i32, i32, i32) {
    %c0_i32 = arith.constant 0 : i32
    %c0_i32_0 = arith.constant 0 : i32
    %c0_i32_1 = arith.constant 0 : i32
    %c0_i32_2 = arith.constant 0 : i32
    return %c0_i32, %c0_i32_0, %c0_i32_1 : i32, i32, i32
  }
  func.func @transform_5(%arg0: i32) -> (i32, i32, i32) {
    %c0_i32 = arith.constant 0 : i32
    %c0_i32_0 = arith.constant 0 : i32
    %c0_i32_1 = arith.constant 0 : i32
    %c0_i32_2 = arith.constant 0 : i32
    return %c0_i32, %c0_i32_0, %c0_i32_1 : i32, i32, i32
  }
  func.func @transform_6(%arg0: i32) -> (i32, i32, i32) {
    %c0_i32 = arith.constant 0 : i32
    %c0_i32_0 = arith.constant 0 : i32
    %c0_i32_1 = arith.constant 0 : i32
    %c0_i32_2 = arith.constant 0 : i32
    return %c0_i32, %c0_i32_0, %c0_i32_1 : i32, i32, i32
  }
  func.func @transform_7(%arg0: i32) -> (i32, i32) {
    %c0_i32 = arith.constant 0 : i32
    %c0_i32_0 = arith.constant 0 : i32
    %c0_i32_1 = arith.constant 0 : i32
    return %c0_i32, %c0_i32_0 : i32, i32
  }
  func.func @transform_8(%arg0: i32) -> (i32, i32, i32) {
    %c0_i32 = arith.constant 0 : i32
    %c0_i32_0 = arith.constant 0 : i32
    %c0_i32_1 = arith.constant 0 : i32
    return %arg0, %c0_i32, %c0_i32_0 : i32, i32, i32
  }
}

</mosaic_0001>

<llo_original>
// kernel: tpu_custom_call.1
$region0: #{tpu_custom_call.1}
  #allocation0 [shape = 'u32[]', space=smem, size = 0x4, offset = 0x4, fixed_abs, tag = 'smem constant byte address 0x4 - core index']
  #allocation1 [shape = 'u32[144,128]{1,0:T(1,128)}', space=vmem, size = 0x12000, scoped, tag = 'internal scratch']
  %s0 = inlined_call_operand.vmem [shape: f32[128,16], index: 0, kind: input, shape index: {}]
  %s1 = inlined_call_operand.vmem [shape: bf16[16,32], index: 1, kind: input, shape index: {}]
  %s2 = inlined_call_operand.vmem [shape: f32[1,32], index: 2, kind: input, shape index: {}]
  %s3 = inlined_call_operand.vmem [shape: bf16[2,32,32], index: 3, kind: input, shape index: {}]
  %s4 = inlined_call_operand.vmem [shape: f32[2,1,32], index: 4, kind: input, shape index: {}]
  %s5 = inlined_call_operand.vmem [shape: bf16[2,32,32], index: 5, kind: input, shape index: {}]
  %s6 = inlined_call_operand.vmem [shape: f32[2,1,32], index: 6, kind: input, shape index: {}]
  %s7 = inlined_call_operand.vmem [shape: bf16[1,32], index: 7, kind: input, shape index: {}]
  %s8 = inlined_call_operand.hbm [shape: f32[1,1,128], index: 8, kind: output, shape index: {}]
  %s9 = sld [smem:[#allocation0]]
  $region42: #{tpu_custom_call.1} parent=0
    _
  %s11 = ssub.s32 1, %s9
  %s12 = scalar_select 0, %s11, %s9
  $region1: #{tpu_custom_call.1} parent=0
    #allocation2 [shape = 'u8[512]{0}', space=vmem, size = 0x400, scoped, tag = 'output window, operand 0, single buffered']
    #allocation3 [shape = 's32[1]{0}', space=sflag, size = 0x4, scoped, tag = 'scoped memory for tpu_custom_call.1']
    %13 = vsyncpa [#allocation3], 0
    // Predicated region
    $region2: #{tpu_custom_call.1} parent=1 // pred_check
      _
    $region3: #{tpu_custom_call.1} parent=1 // pred_check_branch
      %15 = sbr.rel (0) target = $region5
    $region4: #{tpu_custom_call.1} parent=1 // pred_region
      _
    $region5: #{tpu_custom_call.1} parent=1 // pred_fallthru
      _
    // Predicated region
    $region6: #{tpu_custom_call.1} parent=1 // pred_check
      _
    $region7: #{tpu_custom_call.1} parent=1 // pred_check_branch
      %17 = sbr.rel (0) target = $region9
    $region8: #{tpu_custom_call.1} parent=1 // pred_region
      _
    $region9: #{tpu_custom_call.1} parent=1 // pred_fallthru
      _
    // Predicated region
    $region10: #{tpu_custom_call.1} parent=1 // pred_check
      _
    $region11: #{tpu_custom_call.1} parent=1 // pred_check_branch
      %19 = sbr.rel (0) target = $region13
    $region12: #{tpu_custom_call.1} parent=1 // pred_region
      _
    $region13: #{tpu_custom_call.1} parent=1 // pred_fallthru
      _
    // Predicated region
    $region14: #{tpu_custom_call.1} parent=1 // pred_check
      _
    $region15: #{tpu_custom_call.1} parent=1 // pred_check_branch
      %21 = sbr.rel (0) target = $region17
    $region16: #{tpu_custom_call.1} parent=1 // pred_region
      _
    $region17: #{tpu_custom_call.1} parent=1 // pred_fallthru
      _
    // Predicated region
    $region18: #{tpu_custom_call.1} parent=1 // pred_check
      _
    $region19: #{tpu_custom_call.1} parent=1 // pred_check_branch
      %23 = sbr.rel (0) target = $region21
    $region20: #{tpu_custom_call.1} parent=1 // pred_region
      _
    $region21: #{tpu_custom_call.1} parent=1 // pred_fallthru
      _
    // Predicated region
    $region22: #{tpu_custom_call.1} parent=1 // pred_check
      _
    $region23: #{tpu_custom_call.1} parent=1 // pred_check_branch
      %25 = sbr.rel (0) target = $region25
    $region24: #{tpu_custom_call.1} parent=1 // pred_region
      _
    $region25: #{tpu_custom_call.1} parent=1 // pred_fallthru
      _
    // Predicated region
    $region26: #{tpu_custom_call.1} parent=1 // pred_check
      _
    $region27: #{tpu_custom_call.1} parent=1 // pred_check_branch
      %27 = sbr.rel (0) target = $region29
    $region28: #{tpu_custom_call.1} parent=1 // pred_region
      _
    $region29: #{tpu_custom_call.1} parent=1 // pred_fallthru
      _
    // Predicated region
    $region30: #{tpu_custom_call.1} parent=1 // pred_check
      _
    $region31: #{tpu_custom_call.1} parent=1 // pred_check_branch
      %29 = sbr.rel (0) target = $region33
    $region32: #{tpu_custom_call.1} parent=1 // pred_region
      _
    $region33: #{tpu_custom_call.1} parent=1 // pred_fallthru
      _
    %v31 = vld [vmem:[%s0] sm:$0xff]
    %v32 = vld [vmem:[%s0 + $0x8] sm:$0xff]
    %v33 = vld [vmem:[%s0 + $0x10] sm:$0xff]
    %v34 = vld [vmem:[%s0 + $0x18] sm:$0xff]
    %v35 = vld [vmem:[%s0 + $0x20] sm:$0xff]
    %v36 = vld [vmem:[%s0 + $0x28] sm:$0xff]
    %v37 = vld [vmem:[%s0 + $0x30] sm:$0xff]
    %v38 = vld [vmem:[%s0 + $0x38] sm:$0xff]
    %v39 = vld [vmem:[%s0 + $0x40] sm:$0xff]
    %v40 = vld [vmem:[%s0 + $0x48] sm:$0xff]
    %v41 = vld [vmem:[%s0 + $0x50] sm:$0xff]
    %v42 = vld [vmem:[%s0 + $0x58] sm:$0xff]
    %v43 = vld [vmem:[%s0 + $0x60] sm:$0xff]
    %v44 = vld [vmem:[%s0 + $0x68] sm:$0xff]
    %v45 = vld [vmem:[%s0 + $0x70] sm:$0xff]
    %v46 = vld [vmem:[%s0 + $0x78] sm:$0xff]
    %v47 = vpack.c.bf16 %v32, %v31
    %v48 = vpack.c.bf16 %v34, %v33
    %v49 = vpack.c.bf16 %v36, %v35
    %v50 = vpack.c.bf16 %v38, %v37
    %v51 = vpack.c.bf16 %v40, %v39
    %v52 = vpack.c.bf16 %v42, %v41
    %v53 = vpack.c.bf16 %v44, %v43
    %v54 = vpack.c.bf16 %v46, %v45
    %v55 = vld [vmem:[%s1] sm:$0xf]
    %v56 = vld [vmem:[%s1 + $0x4] sm:$0xf]
    %v57 = vld [vmem:[%s2] sm:$0x1]
    %v59 = vlaneseq
    %v60 = vshrl.u32 %v59, 7
    %v61 = vsub.s32 0, %v60
    %v62 = vrot.slane %v57, %v61
    %v66 = vunpack.c.l.b16 %v55
    %v67 = vunpack.c.l.b16 %v56
    %v68 = vpack.c.b16 %v67, %v66
    %vm70 = vcmask 130048
    %v72 = vsel %vm70, %v47, 0
    %v75 = vsel %vm70, %v48, 0
    %v78 = vsel %vm70, %v49, 0
    %v81 = vsel %vm70, %v50, 0
    %v84 = vsel %vm70, %v51, 0
    %v87 = vsel %vm70, %v52, 0
    %v90 = vsel %vm70, %v53, 0
    %v93 = vsel %vm70, %v54, 0
    %95 = vmatprep.subr.bf16.mxu0 0
    %96 = vmatpush1.bf16.msra.mxu0 0
    %97 = vmatprep.subr.bf16.mxu0 0
    %98 = vmatpush1.bf16.msra.mxu0 0
    %99 = vmatprep.subr.bf16.mxu0 0
    %100 = vmatpush1.bf16.msra.mxu0 0
    %101 = vmatprep.subr.bf16.mxu0 0
    %102 = vmatpush1.bf16.msra.mxu0 0
    %103 = vmatprep.subr.bf16.mxu0 0
    %104 = vmatpush1.bf16.msra.mxu0 0
    %105 = vmatprep.subr.bf16.mxu0 0
    %106 = vmatpush1.bf16.msra.mxu0 0
    %107 = vmatprep.subr.bf16.mxu0 0
    %108 = vmatpush1.bf16.msra.mxu0 0
    %109 = vmatprep.subr.bf16.mxu0 0
    %110 = vmatpush1.bf16.msra.mxu0 %v68
    %111 = vmatprep.subr.bf16.mxu0 0
    %112 = vmatpush2.bf16.msra.mxu0 0
    %113 = vmatprep.subr.bf16.mxu0 0
    %114 = vmatpush2.bf16.msra.mxu0 0
    %115 = vmatprep.subr.bf16.mxu0 0
    %116 = vmatpush2.bf16.msra.mxu0 0
    %117 = vmatprep.subr.bf16.mxu0 0
    %118 = vmatpush2.bf16.msra.mxu0 0
    %119 = vmatprep.subr.bf16.mxu0 0
    %120 = vmatpush2.bf16.msra.mxu0 0
    %121 = vmatprep.subr.bf16.mxu0 0
    %122 = vmatpush2.bf16.msra.mxu0 0
    %123 = vmatprep.subr.bf16.mxu0 0
    %124 = vmatpush2.bf16.msra.mxu0 0
    %125 = vmatprep.subr.bf16.mxu0 0
    %126 = vmatpush2.bf16.msra.mxu0 0
    %127 = vmatprep.mubr.bf16.mxu0 0
    %128 = vmatmul.mubr.bf16.gmra.mxu0 %v72
    %v129 = vpop.f32.mrf.mxu0
    %v130 = vadd.f32 %v62, %v129
    %v131 = vpop.f32.mrf.mxu0
    %v132 = vpop.f32.mrf.mxu0
    %v133 = vadd.f32 %v62, %v132
    %v134 = vpop.f32.mrf.mxu0
    %135 = vmatprep.mubr.bf16.mxu0 0
    %136 = vmatmul.mubr.bf16.gmra.mxu0 %v75
    %v137 = vpop.f32.mrf.mxu0
    %v138 = vadd.f32 %v62, %v137
    %v139 = vpop.f32.mrf.mxu0
    %v140 = vpop.f32.mrf.mxu0
    %v141 = vadd.f32 %v62, %v140
    %v142 = vpop.f32.mrf.mxu0
    %143 = vmatprep.mubr.bf16.mxu0 0
    %144 = vmatmul.mubr.bf16.gmra.mxu0 %v78
    %v145 = vpop.f32.mrf.mxu0
    %v146 = vadd.f32 %v62, %v145
    %v147 = vpop.f32.mrf.mxu0
    %v148 = vpop.f32.mrf.mxu0
    %v149 = vadd.f32 %v62, %v148
    %v150 = vpop.f32.mrf.mxu0
    %151 = vmatprep.mubr.bf16.mxu0 0
    %152 = vmatmul.mubr.bf16.gmra.mxu0 %v81
    %v153 = vpop.f32.mrf.mxu0
    %v154 = vadd.f32 %v62, %v153
    %v155 = vpop.f32.mrf.mxu0
    %v156 = vpop.f32.mrf.mxu0
    %v157 = vadd.f32 %v62, %v156
    %v158 = vpop.f32.mrf.mxu0
    %159 = vmatprep.mubr.bf16.mxu0 0
    %160 = vmatmul.mubr.bf16.gmra.mxu0 %v84
    %v161 = vpop.f32.mrf.mxu0
    %v162 = vadd.f32 %v62, %v161
    %v163 = vpop.f32.mrf.mxu0
    %v164 = vpop.f32.mrf.mxu0
    %v165 = vadd.f32 %v62, %v164
    %v166 = vpop.f32.mrf.mxu0
    %167 = vmatprep.mubr.bf16.mxu0 0
    %168 = vmatmul.mubr.bf16.gmra.mxu0 %v87
    %v169 = vpop.f32.mrf.mxu0
    %v170 = vadd.f32 %v62, %v169
    %v171 = vpop.f32.mrf.mxu0
    %v172 = vpop.f32.mrf.mxu0
    %v173 = vadd.f32 %v62, %v172
    %v174 = vpop.f32.mrf.mxu0
    %175 = vmatprep.mubr.bf16.mxu0 0
    %176 = vmatmul.mubr.bf16.gmra.mxu0 %v90
    %v177 = vpop.f32.mrf.mxu0
    %v178 = vadd.f32 %v62, %v177
    %v179 = vpop.f32.mrf.mxu0
    %v180 = vpop.f32.mrf.mxu0
    %v181 = vadd.f32 %v62, %v180
    %v182 = vpop.f32.mrf.mxu0
    %183 = vmatprep.mubr.bf16.mxu0 0
    %184 = vmatmul.mubr.bf16.gmra.mxu0 %v93
    %v185 = vpop.f32.mrf.mxu0
    %v186 = vadd.f32 %v62, %v185
    %v187 = vpop.f32.mrf.mxu0
    %v188 = vpop.f32.mrf.mxu0
    %v189 = vadd.f32 %v62, %v188
    %v190 = vpop.f32.mrf.mxu0
    %191 = vdwg.mxu0
    %v192 = vmul.f32 %v130, 0.2
    %v193 = vmul.f32 %v133, 0.2
    %v194 = vmul.f32 %v138, 0.2
    %v195 = vmul.f32 %v141, 0.2
    %v196 = vmul.f32 %v146, 0.2
    %v197 = vmul.f32 %v149, 0.2
    %v198 = vmul.f32 %v154, 0.2
    %v199 = vmul.f32 %v157, 0.2
    %v200 = vmul.f32 %v162, 0.2
    %v201 = vmul.f32 %v165, 0.2
    %v202 = vmul.f32 %v170, 0.2
    %v203 = vmul.f32 %v173, 0.2
    %v204 = vmul.f32 %v178, 0.2
    %v205 = vmul.f32 %v181, 0.2
    %v206 = vmul.f32 %v186, 0.2
    %v207 = vmul.f32 %v189, 0.2
    %v208 = vmax.f32 %v130, %v192
    %v209 = vmax.f32 %v133, %v193
    %v210 = vmax.f32 %v138, %v194
    %v211 = vmax.f32 %v141, %v195
    %v212 = vmax.f32 %v146, %v196
    %v213 = vmax.f32 %v149, %v197
    %v214 = vmax.f32 %v154, %v198
    %v215 = vmax.f32 %v157, %v199
    %v216 = vmax.f32 %v162, %v200
    %v217 = vmax.f32 %v165, %v201
    %v218 = vmax.f32 %v170, %v202
    %v219 = vmax.f32 %v173, %v203
    %v220 = vmax.f32 %v178, %v204
    %v221 = vmax.f32 %v181, %v205
    %v222 = vmax.f32 %v186, %v206
    %v223 = vmax.f32 %v189, %v207
    %v224 = vpack.c.bf16 %v209, %v208
    %v225 = vpack.c.bf16 %v211, %v210
    %v226 = vpack.c.bf16 %v213, %v212
    %v227 = vpack.c.bf16 %v215, %v214
    %v228 = vpack.c.bf16 %v217, %v216
    %v229 = vpack.c.bf16 %v219, %v218
    %v230 = vpack.c.bf16 %v221, %v220
    %v231 = vpack.c.bf16 %v223, %v222
    %v232 = vld [vmem:[%s3] sm:$0xf]
    %v233 = vld [vmem:[%s3 + $0x4] sm:$0xf]
    %v234 = vld [vmem:[%s3 + $0x8] sm:$0xf]
    %v235 = vld [vmem:[%s3 + $0xc] sm:$0xf]
    %v236 = vld [vmem:[%s4] sm:$0x1]
    %v238 = vlaneseq
    %v239 = vshrl.u32 %v238, 7
    %v240 = vsub.s32 0, %v239
    %v241 = vrot.slane %v236, %v240
    %v247 = vunpack.c.l.b16 %v232
    %v248 = vunpack.c.l.b16 %v233
    %v249 = vunpack.c.l.b16 %v234
    %v250 = vunpack.c.l.b16 %v235
    %v251 = vpack.c.b16 %v248, %v247
    %v252 = vpack.c.b16 %v250, %v249
    %vm255 = vcmask 261120
    %v257 = vsel %vm255, %v224, 0
    %v260 = vsel %vm255, %v225, 0
    %v263 = vsel %vm255, %v226, 0
    %v266 = vsel %vm255, %v227, 0
    %v269 = vsel %vm255, %v228, 0
    %v272 = vsel %vm255, %v229, 0
    %v275 = vsel %vm255, %v230, 0
    %v278 = vsel %vm255, %v231, 0
    %280 = vmatprep.subr.bf16.mxu0 0
    %281 = vmatpush1.bf16.msra.mxu0 0
    %282 = vmatprep.subr.bf16.mxu0 0
    %283 = vmatpush1.bf16.msra.mxu0 0
    %284 = vmatprep.subr.bf16.mxu0 0
    %285 = vmatpush1.bf16.msra.mxu0 0
    %286 = vmatprep.subr.bf16.mxu0 0
    %287 = vmatpush1.bf16.msra.mxu0 0
    %288 = vmatprep.subr.bf16.mxu0 0
    %289 = vmatpush1.bf16.msra.mxu0 0
    %290 = vmatprep.subr.bf16.mxu0 0
    %291 = vmatpush1.bf16.msra.mxu0 0
    %292 = vmatprep.subr.bf16.mxu0 0
    %293 = vmatpush1.bf16.msra.mxu0 %v252
    %294 = vmatprep.subr.bf16.mxu0 0
    %295 = vmatpush1.bf16.msra.mxu0 %v251
    %296 = vmatprep.subr.bf16.mxu0 0
    %297 = vmatpush2.bf16.msra.mxu0 0
    %298 = vmatprep.subr.bf16.mxu0 0
    %299 = vmatpush2.bf16.msra.mxu0 0
    %300 = vmatprep.subr.bf16.mxu0 0
    %301 = vmatpush2.bf16.msra.mxu0 0
    %302 = vmatprep.subr.bf16.mxu0 0
    %303 = vmatpush2.bf16.msra.mxu0 0
    %304 = vmatprep.subr.bf16.mxu0 0
    %305 = vmatpush2.bf16.msra.mxu0 0
    %306 = vmatprep.subr.bf16.mxu0 0
    %307 = vmatpush2.bf16.msra.mxu0 0
    %308 = vmatprep.subr.bf16.mxu0 0
    %309 = vmatpush2.bf16.msra.mxu0 0
    %310 = vmatprep.subr.bf16.mxu0 0
    %311 = vmatpush2.bf16.msra.mxu0 0
    %312 = vmatprep.mubr.bf16.mxu0 0
    %313 = vmatmul.mubr.bf16.gmra.mxu0 %v257
    %v314 = vpop.f32.mrf.mxu0
    %v315 = vadd.f32 %v241, %v314
    %v316 = vpop.f32.mrf.mxu0
    %v317 = vpop.f32.mrf.mxu0
    %v318 = vadd.f32 %v241, %v317
    %v319 = vpop.f32.mrf.mxu0
    %320 = vmatprep.mubr.bf16.mxu0 0
    %321 = vmatmul.mubr.bf16.gmra.mxu0 %v260
    %v322 = vpop.f32.mrf.mxu0
    %v323 = vadd.f32 %v241, %v322
    %v324 = vpop.f32.mrf.mxu0
    %v325 = vpop.f32.mrf.mxu0
    %v326 = vadd.f32 %v241, %v325
    %v327 = vpop.f32.mrf.mxu0
    %328 = vmatprep.mubr.bf16.mxu0 0
    %329 = vmatmul.mubr.bf16.gmra.mxu0 %v263
    %v330 = vpop.f32.mrf.mxu0
    %v331 = vadd.f32 %v241, %v330
    %v332 = vpop.f32.mrf.mxu0
    %v333 = vpop.f32.mrf.mxu0
    %v334 = vadd.f32 %v241, %v333
    %v335 = vpop.f32.mrf.mxu0
    %336 = vmatprep.mubr.bf16.mxu0 0
    %337 = vmatmul.mubr.bf16.gmra.mxu0 %v266
    %v338 = vpop.f32.mrf.mxu0
    %v339 = vadd.f32 %v241, %v338
    %v340 = vpop.f32.mrf.mxu0
    %v341 = vpop.f32.mrf.mxu0
    %v342 = vadd.f32 %v241, %v341
    %v343 = vpop.f32.mrf.mxu0
    %344 = vmatprep.mubr.bf16.mxu0 0
    %345 = vmatmul.mubr.bf16.gmra.mxu0 %v269
    %v346 = vpop.f32.mrf.mxu0
    %v347 = vadd.f32 %v241, %v346
    %v348 = vpop.f32.mrf.mxu0
    %v349 = vpop.f32.mrf.mxu0
    %v350 = vadd.f32 %v241, %v349
    %v351 = vpop.f32.mrf.mxu0
    %352 = vmatprep.mubr.bf16.mxu0 0
    %353 = vmatmul.mubr.bf16.gmra.mxu0 %v272
    %v354 = vpop.f32.mrf.mxu0
    %v355 = vadd.f32 %v241, %v354
    %v356 = vpop.f32.mrf.mxu0
    %v357 = vpop.f32.mrf.mxu0
    %v358 = vadd.f32 %v241, %v357
    %v359 = vpop.f32.mrf.mxu0
    %360 = vmatprep.mubr.bf16.mxu0 0
    %361 = vmatmul.mubr.bf16.gmra.mxu0 %v275
    %v362 = vpop.f32.mrf.mxu0
    %v363 = vadd.f32 %v241, %v362
    %v364 = vpop.f32.mrf.mxu0
    %v365 = vpop.f32.mrf.mxu0
    %v366 = vadd.f32 %v241, %v365
    %v367 = vpop.f32.mrf.mxu0
    %368 = vmatprep.mubr.bf16.mxu0 0
    %369 = vmatmul.mubr.bf16.gmra.mxu0 %v278
    %v370 = vpop.f32.mrf.mxu0
    %v371 = vadd.f32 %v241, %v370
    %v372 = vpop.f32.mrf.mxu0
    %v373 = vpop.f32.mrf.mxu0
    %v374 = vadd.f32 %v241, %v373
    %v375 = vpop.f32.mrf.mxu0
    %376 = vdwg.mxu0
    %v377 = vmul.f32 %v315, 0.2
    %v378 = vmul.f32 %v318, 0.2
    %v379 = vmul.f32 %v323, 0.2
    %v380 = vmul.f32 %v326, 0.2
    %v381 = vmul.f32 %v331, 0.2
    %v382 = vmul.f32 %v334, 0.2
    %v383 = vmul.f32 %v339, 0.2
    %v384 = vmul.f32 %v342, 0.2
    %v385 = vmul.f32 %v347, 0.2
    %v386 = vmul.f32 %v350, 0.2
    %v387 = vmul.f32 %v355, 0.2
    %v388 = vmul.f32 %v358, 0.2
    %v389 = vmul.f32 %v363, 0.2
    %v390 = vmul.f32 %v366, 0.2
    %v391 = vmul.f32 %v371, 0.2
    %v392 = vmul.f32 %v374, 0.2
    %v393 = vmax.f32 %v315, %v377
    %v394 = vmax.f32 %v318, %v378
    %v395 = vmax.f32 %v323, %v379
    %v396 = vmax.f32 %v326, %v380
    %v397 = vmax.f32 %v331, %v381
    %v398 = vmax.f32 %v334, %v382
    %v399 = vmax.f32 %v339, %v383
    %v400 = vmax.f32 %v342, %v384
    %v401 = vmax.f32 %v347, %v385
    %v402 = vmax.f32 %v350, %v386
    %v403 = vmax.f32 %v355, %v387
    %v404 = vmax.f32 %v358, %v388
    %v405 = vmax.f32 %v363, %v389
    %v406 = vmax.f32 %v366, %v390
    %v407 = vmax.f32 %v371, %v391
    %v408 = vmax.f32 %v374, %v392
    %v409 = vpack.c.bf16 %v394, %v393
    %v410 = vpack.c.bf16 %v396, %v395
    %v411 = vpack.c.bf16 %v398, %v397
    %v412 = vpack.c.bf16 %v400, %v399
    %v413 = vpack.c.bf16 %v402, %v401
    %v414 = vpack.c.bf16 %v404, %v403
    %v415 = vpack.c.bf16 %v406, %v405
    %v416 = vpack.c.bf16 %v408, %v407
    %v417 = vld [vmem:[%s5] sm:$0xf]
    %v418 = vld [vmem:[%s5 + $0x4] sm:$0xf]
    %v419 = vld [vmem:[%s5 + $0x8] sm:$0xf]
    %v420 = vld [vmem:[%s5 + $0xc] sm:$0xf]
    %v421 = vld [vmem:[%s6] sm:$0x1]
    %v423 = vlaneseq
    %v424 = vshrl.u32 %v423, 7
    %v425 = vsub.s32 0, %v424
    %v426 = vrot.slane %v421, %v425
    %v432 = vunpack.c.l.b16 %v417
    %v433 = vunpack.c.l.b16 %v418
    %v434 = vunpack.c.l.b16 %v419
    %v435 = vunpack.c.l.b16 %v420
    %v436 = vpack.c.b16 %v433, %v432
    %v437 = vpack.c.b16 %v435, %v434
    %v441 = vsel %vm255, %v409, 0
    %v444 = vsel %vm255, %v410, 0
    %v447 = vsel %vm255, %v411, 0
    %v450 = vsel %vm255, %v412, 0
    %v453 = vsel %vm255, %v413, 0
    %v456 = vsel %vm255, %v414, 0
    %v459 = vsel %vm255, %v415, 0
    %v462 = vsel %vm255, %v416, 0
    %464 = vmatprep.subr.bf16.mxu0 0
    %465 = vmatpush1.bf16.msra.mxu0 0
    %466 = vmatprep.subr.bf16.mxu0 0
    %467 = vmatpush1.bf16.msra.mxu0 0
    %468 = vmatprep.subr.bf16.mxu0 0
    %469 = vmatpush1.bf16.msra.mxu0 0
    %470 = vmatprep.subr.bf16.mxu0 0
    %471 = vmatpush1.bf16.msra.mxu0 0
    %472 = vmatprep.subr.bf16.mxu0 0
    %473 = vmatpush1.bf16.msra.mxu0 0
    %474 = vmatprep.subr.bf16.mxu0 0
    %475 = vmatpush1.bf16.msra.mxu0 0
    %476 = vmatprep.subr.bf16.mxu0 0
    %477 = vmatpush1.bf16.msra.mxu0 %v437
    %478 = vmatprep.subr.bf16.mxu0 0
    %479 = vmatpush1.bf16.msra.mxu0 %v436
    %480 = vmatprep.subr.bf16.mxu0 0
    %481 = vmatpush2.bf16.msra.mxu0 0
    %482 = vmatprep.subr.bf16.mxu0 0
    %483 = vmatpush2.bf16.msra.mxu0 0
    %484 = vmatprep.subr.bf16.mxu0 0
    %485 = vmatpush2.bf16.msra.mxu0 0
    %486 = vmatprep.subr.bf16.mxu0 0
    %487 = vmatpush2.bf16.msra.mxu0 0
    %488 = vmatprep.subr.bf16.mxu0 0
    %489 = vmatpush2.bf16.msra.mxu0 0
    %490 = vmatprep.subr.bf16.mxu0 0
    %491 = vmatpush2.bf16.msra.mxu0 0
    %492 = vmatprep.subr.bf16.mxu0 0
    %493 = vmatpush2.bf16.msra.mxu0 0
    %494 = vmatprep.subr.bf16.mxu0 0
    %495 = vmatpush2.bf16.msra.mxu0 0
    %496 = vmatprep.mubr.bf16.mxu0 0
    %497 = vmatmul.mubr.bf16.gmra.mxu0 %v441
    %v498 = vpop.f32.mrf.mxu0
    %v499 = vadd.f32 %v426, %v498
    %v500 = vpop.f32.mrf.mxu0
    %v501 = vpop.f32.mrf.mxu0
    %v502 = vadd.f32 %v426, %v501
    %v503 = vpop.f32.mrf.mxu0
    %504 = vmatprep.mubr.bf16.mxu0 0
    %505 = vmatmul.mubr.bf16.gmra.mxu0 %v444
    %v506 = vpop.f32.mrf.mxu0
    %v507 = vadd.f32 %v426, %v506
    %v508 = vpop.f32.mrf.mxu0
    %v509 = vpop.f32.mrf.mxu0
    %v510 = vadd.f32 %v426, %v509
    %v511 = vpop.f32.mrf.mxu0
    %512 = vmatprep.mubr.bf16.mxu0 0
    %513 = vmatmul.mubr.bf16.gmra.mxu0 %v447
    %v514 = vpop.f32.mrf.mxu0
    %v515 = vadd.f32 %v426, %v514
    %v516 = vpop.f32.mrf.mxu0
    %v517 = vpop.f32.mrf.mxu0
    %v518 = vadd.f32 %v426, %v517
    %v519 = vpop.f32.mrf.mxu0
    %520 = vmatprep.mubr.bf16.mxu0 0
    %521 = vmatmul.mubr.bf16.gmra.mxu0 %v450
    %v522 = vpop.f32.mrf.mxu0
    %v523 = vadd.f32 %v426, %v522
    %v524 = vpop.f32.mrf.mxu0
    %v525 = vpop.f32.mrf.mxu0
    %v526 = vadd.f32 %v426, %v525
    %v527 = vpop.f32.mrf.mxu0
    %528 = vmatprep.mubr.bf16.mxu0 0
    %529 = vmatmul.mubr.bf16.gmra.mxu0 %v453
    %v530 = vpop.f32.mrf.mxu0
    %v531 = vadd.f32 %v426, %v530
    %v532 = vpop.f32.mrf.mxu0
    %v533 = vpop.f32.mrf.mxu0
    %v534 = vadd.f32 %v426, %v533
    %v535 = vpop.f32.mrf.mxu0
    %536 = vmatprep.mubr.bf16.mxu0 0
    %537 = vmatmul.mubr.bf16.gmra.mxu0 %v456
    %v538 = vpop.f32.mrf.mxu0
    %v539 = vadd.f32 %v426, %v538
    %v540 = vpop.f32.mrf.mxu0
    %v541 = vpop.f32.mrf.mxu0
    %v542 = vadd.f32 %v426, %v541
    %v543 = vpop.f32.mrf.mxu0
    %544 = vmatprep.mubr.bf16.mxu0 0
    %545 = vmatmul.mubr.bf16.gmra.mxu0 %v459
    %v546 = vpop.f32.mrf.mxu0
    %v547 = vadd.f32 %v426, %v546
    %v548 = vpop.f32.mrf.mxu0
    %v549 = vpop.f32.mrf.mxu0
    %v550 = vadd.f32 %v426, %v549
    %v551 = vpop.f32.mrf.mxu0
    %552 = vmatprep.mubr.bf16.mxu0 0
    %553 = vmatmul.mubr.bf16.gmra.mxu0 %v462
    %v554 = vpop.f32.mrf.mxu0
    %v555 = vadd.f32 %v426, %v554
    %v556 = vpop.f32.mrf.mxu0
    %v557 = vpop.f32.mrf.mxu0
    %v558 = vadd.f32 %v426, %v557
    %v559 = vpop.f32.mrf.mxu0
    %560 = vdwg.mxu0
    %v561 = vadd.f32 %v499, %v208
    %v562 = vadd.f32 %v502, %v209
    %v563 = vadd.f32 %v507, %v210
    %v564 = vadd.f32 %v510, %v211
    %v565 = vadd.f32 %v515, %v212
    %v566 = vadd.f32 %v518, %v213
    %v567 = vadd.f32 %v523, %v214
    %v568 = vadd.f32 %v526, %v215
    %v569 = vadd.f32 %v531, %v216
    %v570 = vadd.f32 %v534, %v217
    %v571 = vadd.f32 %v539, %v218
    %v572 = vadd.f32 %v542, %v219
    %v573 = vadd.f32 %v547, %v220
    %v574 = vadd.f32 %v550, %v221
    %v575 = vadd.f32 %v555, %v222
    %v576 = vadd.f32 %v558, %v223
    %v577 = vmul.f32 %v561, 0.2
    %v578 = vmul.f32 %v562, 0.2
    %v579 = vmul.f32 %v563, 0.2
    %v580 = vmul.f32 %v564, 0.2
    %v581 = vmul.f32 %v565, 0.2
    %v582 = vmul.f32 %v566, 0.2
    %v583 = vmul.f32 %v567, 0.2
    %v584 = vmul.f32 %v568, 0.2
    %v585 = vmul.f32 %v569, 0.2
    %v586 = vmul.f32 %v570, 0.2
    %v587 = vmul.f32 %v571, 0.2
    %v588 = vmul.f32 %v572, 0.2
    %v589 = vmul.f32 %v573, 0.2
    %v590 = vmul.f32 %v574, 0.2
    %v591 = vmul.f32 %v575, 0.2
    %v592 = vmul.f32 %v576, 0.2
    %v593 = vmax.f32 %v561, %v577
    %v594 = vmax.f32 %v562, %v578
    %v595 = vmax.f32 %v563, %v579
    %v596 = vmax.f32 %v564, %v580
    %v597 = vmax.f32 %v565, %v581
    %v598 = vmax.f32 %v566, %v582
    %v599 = vmax.f32 %v567, %v583
    %v600 = vmax.f32 %v568, %v584
    %v601 = vmax.f32 %v569, %v585
    %v602 = vmax.f32 %v570, %v586
    %v603 = vmax.f32 %v571, %v587
    %v604 = vmax.f32 %v572, %v588
    %v605 = vmax.f32 %v573, %v589
    %v606 = vmax.f32 %v574, %v590
    %v607 = vmax.f32 %v575, %v591
    %v608 = vmax.f32 %v576, %v592
    %v609 = vpack.c.bf16 %v594, %v593
    %v610 = vpack.c.bf16 %v596, %v595
    %v611 = vpack.c.bf16 %v598, %v597
    %v612 = vpack.c.bf16 %v600, %v599
    %v613 = vpack.c.bf16 %v602, %v601
    %v614 = vpack.c.bf16 %v604, %v603
    %v615 = vpack.c.bf16 %v606, %v605
    %v616 = vpack.c.bf16 %v608, %v607
    %s617 = scalar_lea.vmem %s3, 16
    %v618 = vld [vmem:[%s617] sm:$0xf]
    %v619 = vld [vmem:[%s617 + $0x4] sm:$0xf]
    %v620 = vld [vmem:[%s617 + $0x8] sm:$0xf]
    %v621 = vld [vmem:[%s617 + $0xc] sm:$0xf]
    %s622 = scalar_lea.vmem %s4, 1
    %v623 = vld [vmem:[%s622] sm:$0x1]
    %v625 = vlaneseq
    %v626 = vshrl.u32 %v625, 7
    %v627 = vsub.s32 0, %v626
    %v628 = vrot.slane %v623, %v627
    %v634 = vunpack.c.l.b16 %v618
    %v635 = vunpack.c.l.b16 %v619
    %v636 = vunpack.c.l.b16 %v620
    %v637 = vunpack.c.l.b16 %v621
    %v638 = vpack.c.b16 %v635, %v634
    %v639 = vpack.c.b16 %v637, %v636
    %v643 = vsel %vm255, %v609, 0
    %v646 = vsel %vm255, %v610, 0
    %v649 = vsel %vm255, %v611, 0
    %v652 = vsel %vm255, %v612, 0
    %v655 = vsel %vm255, %v613, 0
    %v658 = vsel %vm255, %v614, 0
    %v661 = vsel %vm255, %v615, 0
    %v664 = vsel %vm255, %v616, 0
    %666 = vmatprep.subr.bf16.mxu0 0
    %667 = vmatpush1.bf16.msra.mxu0 0
    %668 = vmatprep.subr.bf16.mxu0 0
    %669 = vmatpush1.bf16.msra.mxu0 0
    %670 = vmatprep.subr.bf16.mxu0 0
    %671 = vmatpush1.bf16.msra.mxu0 0
    %672 = vmatprep.subr.bf16.mxu0 0
    %673 = vmatpush1.bf16.msra.mxu0 0
    %674 = vmatprep.subr.bf16.mxu0 0
    %675 = vmatpush1.bf16.msra.mxu0 0
    %676 = vmatprep.subr.bf16.mxu0 0
    %677 = vmatpush1.bf16.msra.mxu0 0
    %678 = vmatprep.subr.bf16.mxu0 0
    %679 = vmatpush1.bf16.msra.mxu0 %v639
    %680 = vmatprep.subr.bf16.mxu0 0
    %681 = vmatpush1.bf16.msra.mxu0 %v638
    %682 = vmatprep.subr.bf16.mxu0 0
    %683 = vmatpush2.bf16.msra.mxu0 0
    %684 = vmatprep.subr.bf16.mxu0 0
    %685 = vmatpush2.bf16.msra.mxu0 0
    %686 = vmatprep.subr.bf16.mxu0 0
    %687 = vmatpush2.bf16.msra.mxu0 0
    %688 = vmatprep.subr.bf16.mxu0 0
    %689 = vmatpush2.bf16.msra.mxu0 0
    %690 = vmatprep.subr.bf16.mxu0 0
    %691 = vmatpush2.bf16.msra.mxu0 0
    %692 = vmatprep.subr.bf16.mxu0 0
    %693 = vmatpush2.bf16.msra.mxu0 0
    %694 = vmatprep.subr.bf16.mxu0 0
    %695 = vmatpush2.bf16.msra.mxu0 0
    %696 = vmatprep.subr.bf16.mxu0 0
    %697 = vmatpush2.bf16.msra.mxu0 0
    %698 = vmatprep.mubr.bf16.mxu0 0
    %699 = vmatmul.mubr.bf16.gmra.mxu0 %v643
    %v700 = vpop.f32.mrf.mxu0
    %v701 = vadd.f32 %v628, %v700
    %v702 = vpop.f32.mrf.mxu0
    %v703 = vpop.f32.mrf.mxu0
    %v704 = vadd.f32 %v628, %v703
    %v705 = vpop.f32.mrf.mxu0
    %706 = vmatprep.mubr.bf16.mxu0 0
    %707 = vmatmul.mubr.bf16.gmra.mxu0 %v646
    %v708 = vpop.f32.mrf.mxu0
    %v709 = vadd.f32 %v628, %v708
    %v710 = vpop.f32.mrf.mxu0
    %v711 = vpop.f32.mrf.mxu0
    %v712 = vadd.f32 %v628, %v711
    %v713 = vpop.f32.mrf.mxu0
    %714 = vmatprep.mubr.bf16.mxu0 0
    %715 = vmatmul.mubr.bf16.gmra.mxu0 %v649
    %v716 = vpop.f32.mrf.mxu0
    %v717 = vadd.f32 %v628, %v716
    %v718 = vpop.f32.mrf.mxu0
    %v719 = vpop.f32.mrf.mxu0
    %v720 = vadd.f32 %v628, %v719
    %v721 = vpop.f32.mrf.mxu0
    %722 = vmatprep.mubr.bf16.mxu0 0
    %723 = vmatmul.mubr.bf16.gmra.mxu0 %v652
    %v724 = vpop.f32.mrf.mxu0
    %v725 = vadd.f32 %v628, %v724
    %v726 = vpop.f32.mrf.mxu0
    %v727 = vpop.f32.mrf.mxu0
    %v728 = vadd.f32 %v628, %v727
    %v729 = vpop.f32.mrf.mxu0
    %730 = vmatprep.mubr.bf16.mxu0 0
    %731 = vmatmul.mubr.bf16.gmra.mxu0 %v655
    %v732 = vpop.f32.mrf.mxu0
    %v733 = vadd.f32 %v628, %v732
    %v734 = vpop.f32.mrf.mxu0
    %v735 = vpop.f32.mrf.mxu0
    %v736 = vadd.f32 %v628, %v735
    %v737 = vpop.f32.mrf.mxu0
    %738 = vmatprep.mubr.bf16.mxu0 0
    %739 = vmatmul.mubr.bf16.gmra.mxu0 %v658
    %v740 = vpop.f32.mrf.mxu0
    %v741 = vadd.f32 %v628, %v740
    %v742 = vpop.f32.mrf.mxu0
    %v743 = vpop.f32.mrf.mxu0
    %v744 = vadd.f32 %v628, %v743
    %v745 = vpop.f32.mrf.mxu0
    %746 = vmatprep.mubr.bf16.mxu0 0
    %747 = vmatmul.mubr.bf16.gmra.mxu0 %v661
    %v748 = vpop.f32.mrf.mxu0
    %v749 = vadd.f32 %v628, %v748
    %v750 = vpop.f32.mrf.mxu0
    %v751 = vpop.f32.mrf.mxu0
    %v752 = vadd.f32 %v628, %v751
    %v753 = vpop.f32.mrf.mxu0
    %754 = vmatprep.mubr.bf16.mxu0 0
    %755 = vmatmul.mubr.bf16.gmra.mxu0 %v664
    %v756 = vpop.f32.mrf.mxu0
    %v757 = vadd.f32 %v628, %v756
    %v758 = vpop.f32.mrf.mxu0
    %v759 = vpop.f32.mrf.mxu0
    %v760 = vadd.f32 %v628, %v759
    %v761 = vpop.f32.mrf.mxu0
    %762 = vdwg.mxu0
    %v763 = vmul.f32 %v701, 0.2
    %v764 = vmul.f32 %v704, 0.2
    %v765 = vmul.f32 %v709, 0.2
    %v766 = vmul.f32 %v712, 0.2
    %v767 = vmul.f32 %v717, 0.2
    %v768 = vmul.f32 %v720, 0.2
    %v769 = vmul.f32 %v725, 0.2
    %v770 = vmul.f32 %v728, 0.2
    %v771 = vmul.f32 %v733, 0.2
    %v772 = vmul.f32 %v736, 0.2
    %v773 = vmul.f32 %v741, 0.2
    %v774 = vmul.f32 %v744, 0.2
    %v775 = vmul.f32 %v749, 0.2
    %v776 = vmul.f32 %v752, 0.2
    %v777 = vmul.f32 %v757, 0.2
    %v778 = vmul.f32 %v760, 0.2
    %v779 = vmax.f32 %v701, %v763
    %v780 = vmax.f32 %v704, %v764
    %v781 = vmax.f32 %v709, %v765
    %v782 = vmax.f32 %v712, %v766
    %v783 = vmax.f32 %v717, %v767
    %v784 = vmax.f32 %v720, %v768
    %v785 = vmax.f32 %v725, %v769
    %v786 = vmax.f32 %v728, %v770
    %v787 = vmax.f32 %v733, %v771
    %v788 = vmax.f32 %v736, %v772
    %v789 = vmax.f32 %v741, %v773
    %v790 = vmax.f32 %v744, %v774
    %v791 = vmax.f32 %v749, %v775
    %v792 = vmax.f32 %v752, %v776
    %v793 = vmax.f32 %v757, %v777
    %v794 = vmax.f32 %v760, %v778
    %v795 = vpack.c.bf16 %v780, %v779
    %v796 = vpack.c.bf16 %v782, %v781
    %v797 = vpack.c.bf16 %v784, %v783
    %v798 = vpack.c.bf16 %v786, %v785
    %v799 = vpack.c.bf16 %v788, %v787
    %v800 = vpack.c.bf16 %v790, %v789
    %v801 = vpack.c.bf16 %v792, %v791
    %v802 = vpack.c.bf16 %v794, %v793
    %s803 = scalar_lea.vmem %s5, 16
    %v804 = vld [vmem:[%s803] sm:$0xf]
    %v805 = vld [vmem:[%s803 + $0x4] sm:$0xf]
    %v806 = vld [vmem:[%s803 + $0x8] sm:$0xf]
    %v807 = vld [vmem:[%s803 + $0xc] sm:$0xf]
    %s808 = scalar_lea.vmem %s6, 1
    %v809 = vld [vmem:[%s808] sm:$0x1]
    %v811 = vlaneseq
    %v812 = vshrl.u32 %v811, 7
    %v813 = vsub.s32 0, %v812
    %v814 = vrot.slane %v809, %v813
    %v820 = vunpack.c.l.b16 %v804
    %v821 = vunpack.c.l.b16 %v805
    %v822 = vunpack.c.l.b16 %v806
    %v823 = vunpack.c.l.b16 %v807
    %v824 = vpack.c.b16 %v821, %v820
    %v825 = vpack.c.b16 %v823, %v822
    %v829 = vsel %vm255, %v795, 0
    %v832 = vsel %vm255, %v796, 0
    %v835 = vsel %vm255, %v797, 0
    %v838 = vsel %vm255, %v798, 0
    %v841 = vsel %vm255, %v799, 0
    %v844 = vsel %vm255, %v800, 0
    %v847 = vsel %vm255, %v801, 0
    %v850 = vsel %vm255, %v802, 0
    %852 = vmatprep.subr.bf16.mxu0 0
    %853 = vmatpush1.bf16.msra.mxu0 0
    %854 = vmatprep.subr.bf16.mxu0 0
    %855 = vmatpush1.bf16.msra.mxu0 0
    %856 = vmatprep.subr.bf16.mxu0 0
    %857 = vmatpush1.bf16.msra.mxu0 0
    %858 = vmatprep.subr.bf16.mxu0 0
    %859 = vmatpush1.bf16.msra.mxu0 0
    %860 = vmatprep.subr.bf16.mxu0 0
    %861 = vmatpush1.bf16.msra.mxu0 0
    %862 = vmatprep.subr.bf16.mxu0 0
    %863 = vmatpush1.bf16.msra.mxu0 0
    %864 = vmatprep.subr.bf16.mxu0 0
    %865 = vmatpush1.bf16.msra.mxu0 %v825
    %866 = vmatprep.subr.bf16.mxu0 0
    %867 = vmatpush1.bf16.msra.mxu0 %v824
    %868 = vmatprep.subr.bf16.mxu0 0
    %869 = vmatpush2.bf16.msra.mxu0 0
    %870 = vmatprep.subr.bf16.mxu0 0
    %871 = vmatpush2.bf16.msra.mxu0 0
    %872 = vmatprep.subr.bf16.mxu0 0
    %873 = vmatpush2.bf16.msra.mxu0 0
    %874 = vmatprep.subr.bf16.mxu0 0
    %875 = vmatpush2.bf16.msra.mxu0 0
    %876 = vmatprep.subr.bf16.mxu0 0
    %877 = vmatpush2.bf16.msra.mxu0 0
    %878 = vmatprep.subr.bf16.mxu0 0
    %879 = vmatpush2.bf16.msra.mxu0 0
    %880 = vmatprep.subr.bf16.mxu0 0
    %881 = vmatpush2.bf16.msra.mxu0 0
    %882 = vmatprep.subr.bf16.mxu0 0
    %883 = vmatpush2.bf16.msra.mxu0 0
    %884 = vmatprep.mubr.bf16.mxu0 0
    %885 = vmatmul.mubr.bf16.gmra.mxu0 %v829
    %v886 = vpop.f32.mrf.mxu0
    %v887 = vadd.f32 %v814, %v886
    %v888 = vpop.f32.mrf.mxu0
    %v889 = vpop.f32.mrf.mxu0
    %v890 = vadd.f32 %v814, %v889
    %v891 = vpop.f32.mrf.mxu0
    %892 = vmatprep.mubr.bf16.mxu0 0
    %893 = vmatmul.mubr.bf16.gmra.mxu0 %v832
    %v894 = vpop.f32.mrf.mxu0
    %v895 = vadd.f32 %v814, %v894
    %v896 = vpop.f32.mrf.mxu0
    %v897 = vpop.f32.mrf.mxu0
    %v898 = vadd.f32 %v814, %v897
    %v899 = vpop.f32.mrf.mxu0
    %900 = vmatprep.mubr.bf16.mxu0 0
    %901 = vmatmul.mubr.bf16.gmra.mxu0 %v835
    %v902 = vpop.f32.mrf.mxu0
    %v903 = vadd.f32 %v814, %v902
    %v904 = vpop.f32.mrf.mxu0
    %v905 = vpop.f32.mrf.mxu0
    %v906 = vadd.f32 %v814, %v905
    %v907 = vpop.f32.mrf.mxu0
    %908 = vmatprep.mubr.bf16.mxu0 0
    %909 = vmatmul.mubr.bf16.gmra.mxu0 %v838
    %v910 = vpop.f32.mrf.mxu0
    %v911 = vadd.f32 %v814, %v910
    %v912 = vpop.f32.mrf.mxu0
    %v913 = vpop.f32.mrf.mxu0
    %v914 = vadd.f32 %v814, %v913
    %v915 = vpop.f32.mrf.mxu0
    %916 = vmatprep.mubr.bf16.mxu0 0
    %917 = vmatmul.mubr.bf16.gmra.mxu0 %v841
    %v918 = vpop.f32.mrf.mxu0
    %v919 = vadd.f32 %v814, %v918
    %v920 = vpop.f32.mrf.mxu0
    %v921 = vpop.f32.mrf.mxu0
    %v922 = vadd.f32 %v814, %v921
    %v923 = vpop.f32.mrf.mxu0
    %924 = vmatprep.mubr.bf16.mxu0 0
    %925 = vmatmul.mubr.bf16.gmra.mxu0 %v844
    %v926 = vpop.f32.mrf.mxu0
    %v927 = vadd.f32 %v814, %v926
    %v928 = vpop.f32.mrf.mxu0
    %v929 = vpop.f32.mrf.mxu0
    %v930 = vadd.f32 %v814, %v929
    %v931 = vpop.f32.mrf.mxu0
    %932 = vmatprep.mubr.bf16.mxu0 0
    %933 = vmatmul.mubr.bf16.gmra.mxu0 %v847
    %v934 = vpop.f32.mrf.mxu0
    %v935 = vadd.f32 %v814, %v934
    %v936 = vpop.f32.mrf.mxu0
    %v937 = vpop.f32.mrf.mxu0
    %v938 = vadd.f32 %v814, %v937
    %v939 = vpop.f32.mrf.mxu0
    %940 = vmatprep.mubr.bf16.mxu0 0
    %941 = vmatmul.mubr.bf16.gmra.mxu0 %v850
    %v942 = vpop.f32.mrf.mxu0
    %v943 = vadd.f32 %v814, %v942
    %v944 = vpop.f32.mrf.mxu0
    %v945 = vpop.f32.mrf.mxu0
    %v946 = vadd.f32 %v814, %v945
    %v947 = vpop.f32.mrf.mxu0
    %948 = vdwg.mxu0
    %v949 = vadd.f32 %v887, %v593
    %v950 = vadd.f32 %v890, %v594
    %v951 = vadd.f32 %v895, %v595
    %v952 = vadd.f32 %v898, %v596
    %v953 = vadd.f32 %v903, %v597
    %v954 = vadd.f32 %v906, %v598
    %v955 = vadd.f32 %v911, %v599
    %v956 = vadd.f32 %v914, %v600
    %v957 = vadd.f32 %v919, %v601
    %v958 = vadd.f32 %v922, %v602
    %v959 = vadd.f32 %v927, %v603
    %v960 = vadd.f32 %v930, %v604
    %v961 = vadd.f32 %v935, %v605
    %v962 = vadd.f32 %v938, %v606
    %v963 = vadd.f32 %v943, %v607
    %v964 = vadd.f32 %v946, %v608
    %v965 = vmul.f32 %v949, 0.2
    %v966 = vmul.f32 %v950, 0.2
    %v967 = vmul.f32 %v951, 0.2
    %v968 = vmul.f32 %v952, 0.2
    %v969 = vmul.f32 %v953, 0.2
    %v970 = vmul.f32 %v954, 0.2
    %v971 = vmul.f32 %v955, 0.2
    %v972 = vmul.f32 %v956, 0.2
    %v973 = vmul.f32 %v957, 0.2
    %v974 = vmul.f32 %v958, 0.2
    %v975 = vmul.f32 %v959, 0.2
    %v976 = vmul.f32 %v960, 0.2
    %v977 = vmul.f32 %v961, 0.2
    %v978 = vmul.f32 %v962, 0.2
    %v979 = vmul.f32 %v963, 0.2
    %v980 = vmul.f32 %v964, 0.2
    %v981 = vmax.f32 %v949, %v965
    %v982 = vmax.f32 %v950, %v966
    %v983 = vmax.f32 %v951, %v967
    %v984 = vmax.f32 %v952, %v968
    %v985 = vmax.f32 %v953, %v969
    %v986 = vmax.f32 %v954, %v970
    %v987 = vmax.f32 %v955, %v971
    %v988 = vmax.f32 %v956, %v972
    %v989 = vmax.f32 %v957, %v973
    %v990 = vmax.f32 %v958, %v974
    %v991 = vmax.f32 %v959, %v975
    %v992 = vmax.f32 %v960, %v976
    %v993 = vmax.f32 %v961, %v977
    %v994 = vmax.f32 %v962, %v978
    %v995 = vmax.f32 %v963, %v979
    %v996 = vmax.f32 %v964, %v980
    %v997 = vld [vmem:[%s7] sm:$0x1]
    %v998 = vpack.c.bf16 %v982, %v981
    %v999 = vpack.c.bf16 %v984, %v983
    %v1000 = vpack.c.bf16 %v986, %v985
    %v1001 = vpack.c.bf16 %v988, %v987
    %v1002 = vpack.c.bf16 %v990, %v989
    %v1003 = vpack.c.bf16 %v992, %v991
    %v1004 = vpack.c.bf16 %v994, %v993
    %v1005 = vpack.c.bf16 %v996, %v995
    %v1007 = vsel %vm255, %v997, 0
    %v1010 = vsel %vm255, %v998, 0
    %v1013 = vsel %vm255, %v999, 0
    %v1016 = vsel %vm255, %v1000, 0
    %v1019 = vsel %vm255, %v1001, 0
    %v1022 = vsel %vm255, %v1002, 0
    %v1025 = vsel %vm255, %v1003, 0
    %v1028 = vsel %vm255, %v1004, 0
    %v1031 = vsel %vm255, %v1005, 0
    %1033 = vmatprep.subr.bf16.mxu0 0
    %1034 = vmatpush1.bf16.xpose.msra.mxu0 %v1031
    %1035 = vmatprep.subr.bf16.mxu0 0
    %1036 = vmatpush1.bf16.xpose.msra.mxu0 %v1028
    %1037 = vmatprep.subr.bf16.mxu0 0
    %1038 = vmatpush1.bf16.xpose.msra.mxu0 %v1025
    %1039 = vmatprep.subr.bf16.mxu0 0
    %1040 = vmatpush1.bf16.xpose.msra.mxu0 %v1022
    %1041 = vmatprep.subr.bf16.mxu0 0
    %1042 = vmatpush1.bf16.xpose.msra.mxu0 %v1019
    %1043 = vmatprep.subr.bf16.mxu0 0
    %1044 = vmatpush1.bf16.xpose.msra.mxu0 %v1016
    %1045 = vmatprep.subr.bf16.mxu0 0
    %1046 = vmatpush1.bf16.xpose.msra.mxu0 %v1013
    %1047 = vmatprep.subr.bf16.mxu0 0
    %1048 = vmatpush1.bf16.xpose.msra.mxu0 %v1010
    %1049 = vmatprep.subr.bf16.mxu0 0
    %1050 = vmatpush2.bf16.xpose.msra.mxu0 0
    %1051 = vmatprep.subr.bf16.mxu0 0
    %1052 = vmatpush2.bf16.xpose.msra.mxu0 0
    %1053 = vmatprep.subr.bf16.mxu0 0
    %1054 = vmatpush2.bf16.xpose.msra.mxu0 0
    %1055 = vmatprep.subr.bf16.mxu0 0
    %1056 = vmatpush2.bf16.xpose.msra.mxu0 0
    %1057 = vmatprep.subr.bf16.mxu0 0
    %1058 = vmatpush2.bf16.xpose.msra.mxu0 0
    %1059 = vmatprep.subr.bf16.mxu0 0
    %1060 = vmatpush2.bf16.xpose.msra.mxu0 0
    %1061 = vmatprep.subr.bf16.mxu0 0
    %1062 = vmatpush2.bf16.xpose.msra.mxu0 0
    %1063 = vmatprep.subr.bf16.mxu0 0
    %1064 = vmatpush2.bf16.xpose.msra.mxu0 0
    %1065 = vmatprep.mubr.bf16.mxu0 0
    %1066 = vmatmul.mubr.bf16.gmra.mxu0 %v1007
    %v1067 = vpop.f32.mrf.mxu0
    %v1068 = vadd.f32 0.0, %v1067
    %v1069 = vpop.f32.mrf.mxu0
    %v1070 = vpop.f32.mrf.mxu0
    %v1071 = vpop.f32.mrf.mxu0
    %1072 = vdwg.mxu0
    %1073 = vst [vmem:[#allocation2] sm:$0x1] %v1068
    // Predicated region
    $region34: #{tpu_custom_call.1} parent=1 // pred_check
      _
    $region35: #{tpu_custom_call.1} parent=1 // pred_check_branch
      %1075 = sbr.rel (0) target = $region37
    $region36: #{tpu_custom_call.1} parent=1 // pred_region
      %s1077 = ssub.s32 16, 16
      %1078 = vsyncadd [#allocation3], %s1077
      %s1080 = sshll.u32 [#allocation2], 4
      %s1081 = int_to_ptr.vmem [resolvable:$true] %s1080
      %1083 = dma.vmem_to_hbm [thread:$0]  %s1081, 16, %s8, [#allocation3]
    $region37: #{tpu_custom_call.1} parent=1 // pred_fallthru
      _
    // Predicated region
    $region38: #{tpu_custom_call.1} parent=1 // pred_check
      _
    $region39: #{tpu_custom_call.1} parent=1 // pred_check_branch
      %1085 = sbr.rel (0) target = $region41
    $region40: #{tpu_custom_call.1} parent=1 // pred_region
      %1086 = dma.done [#allocation3], 16
    $region41: #{tpu_custom_call.1} parent=1 // pred_fallthru
      _
    %1087 = vsyncpa [#allocation3], 1

</llo_original>
